<compile_context>
chip_gen: v6e
topology: v6e:2x2x1
jax: 0.10.0
libtpu: 0.0.40
codegen_flags: <defaults>
</compile_context>

<pallas_src>
import jax
import jax.numpy as jnp
import numpy as np
from jax.experimental import pallas as pl
from jax.experimental.pallas import tpu as pltpu

H, W = 6, 7
NUM_PATCHES = H * W          # 42
SEQ = NUM_PATCHES + 1        # 43


def _patch_embed_kernel(x_ref, w_ref, add_ref, o_ref):
    # x_ref:   (rows, C_in)  rows = BLOCK_BATCH * SEQ flattened pixels
    #                        (row 0 of every sequence is a zero row -> cls slot)
    # w_ref:   (C_in, E)     1x1-conv weight as a matmul operand
    # add_ref: (rows, E)     per-row additive table: cls+pos[0] / bias+pos[1:]
    # o_ref:   (rows, E)
    o_ref[...] = (jnp.dot(x_ref[...], w_ref[...],
                          preferred_element_type=jnp.float32)
                  + add_ref[...]).astype(o_ref.dtype)


def patch_embedding(x_nchw, w, b, cls_token, pos_embed, block_batch=8):
    """x_nchw: (N, C_in, 6, 7) f32 -> (N, SEQ, E) f32.

    w: (C_in, E) matmul form of Conv2d(C_in, E, 1x1) weight,
    b: (E,), cls_token: (1, 1, E), pos_embed: (1, SEQ, E).
    """
    N, C_in, h, w_ = x_nchw.shape
    assert (h, w_) == (H, W)
    assert block_batch % 8 == 0, "block_batch must keep rows sublane-aligned"
    E = w.shape[1]

    # --- wrapper glue (plain JAX, all cheap/fusible) ---------------------
    # NCHW -> (N, HW, C_in), then prepend one zero row per sequence so the
    # cls position is handled by the additive table instead of a concat.
    x_flat = jnp.transpose(x_nchw, (0, 2, 3, 1)).reshape(N, NUM_PATCHES, C_in)
    x_seq = jnp.pad(x_flat, ((0, 0), (1, 0), (0, 0)))            # (N, SEQ, C_in)

    # Fused additive table: row 0 gets cls + pos[0] (NO conv bias there),
    # rows 1.. get bias + pos[1:].
    pos2 = pos_embed.reshape(SEQ, E)
    add_tbl = jnp.concatenate(
        [cls_token.reshape(1, E) + pos2[:1],
         pos2[1:] + b.reshape(1, E)], axis=0)                    # (SEQ, E)

    # Pick the batch tile: whole batch if small, else block_batch (multiple
    # of 8 so block rows = B*43 stays divisible by 8 when grid > 1).
    if N <= block_batch:
        B = N
        n_pad = N
    else:
        B = block_batch
        n_pad = pl.cdiv(N, B) * B
        x_seq = jnp.pad(x_seq, ((0, n_pad - N), (0, 0), (0, 0)))

    rows = B * SEQ
    x2 = x_seq.reshape(n_pad * SEQ, C_in)                        # flat rows
    add_tiled = jnp.tile(add_tbl, (B, 1))                        # (rows, E)

    out2 = pl.pallas_call(
        _patch_embed_kernel,
        out_shape=jax.ShapeDtypeStruct((n_pad * SEQ, E), jnp.float32),
        grid_spec=pltpu.PrefetchScalarGridSpec(
            num_scalar_prefetch=0,
            grid=(n_pad // B,),
            in_specs=[
                pl.BlockSpec((rows, C_in), lambda i: (i, 0)),
                pl.BlockSpec((C_in, E), lambda i: (0, 0)),
                pl.BlockSpec((rows, E), lambda i: (0, 0)),
            ],
            out_specs=pl.BlockSpec((rows, E), lambda i: (i, 0)),
        ),
        compiler_params=pltpu.CompilerParams(
            dimension_semantics=("parallel",)),
    )(x2, w, add_tiled)

    # Free reshape back to (N, SEQ, E); drop any batch padding.
    return out2.reshape(n_pad, SEQ, E)[:N]


def _reference(x, w, b, cls_token, pos_embed):
    N, C_in = x.shape[0], x.shape[1]
    E = w.shape[1]
    x_flat = jnp.transpose(x, (0, 2, 3, 1)).reshape(N, NUM_PATCHES, C_in)
    proj = jnp.einsum("npc,ce->npe", x_flat, w) + b
    cls = jnp.broadcast_to(cls_token, (N, 1, E))
    return jnp.concatenate([cls, proj], axis=1) + pos_embed


if __name__ == "__main__":
    key = jax.random.PRNGKey(0)
    k_x, k_w, k_b, k_cls, k_pos, k_x2 = jax.random.split(key, 6)

    C_IN = 3          # in_channels default of the module
    EMBED = 128       # embed_dim default of the module

    # Conv2d(C_IN, EMBED, kernel_size=(1,1)) weight is (EMBED, C_IN, 1, 1);
    # we keep its matmul form (C_IN, EMBED).
    w = jax.random.normal(k_w, (C_IN, EMBED), dtype=jnp.float32) * 0.1
    b = jax.random.normal(k_b, (EMBED,), dtype=jnp.float32) * 0.1
    cls_token = jax.random.normal(k_cls, (1, 1, EMBED), dtype=jnp.float32)
    # TODO(synk): nn.init.orthogonal_ replaced with plain Gaussian init
    # (synthetic weights; orthogonality does not affect forward semantics).
    pos_embed = jax.random.normal(k_pos, (1, SEQ, EMBED), dtype=jnp.float32)

    # Small batch (single-block path).
    x_small = jax.random.normal(k_x, (2, C_IN, H, W), dtype=jnp.float32)
    out_small = jax.block_until_ready(
        patch_embedding(x_small, w, b, cls_token, pos_embed))
    np.testing.assert_allclose(
        np.asarray(out_small),
        np.asarray(_reference(x_small, w, b, cls_token, pos_embed)),
        rtol=1e-5, atol=1e-5)

    # Larger batch (multi-block + batch-padding path).
    x_big = jax.random.normal(k_x2, (10, C_IN, H, W), dtype=jnp.float32)
    out_big = jax.block_until_ready(
        patch_embedding(x_big, w, b, cls_token, pos_embed))
    np.testing.assert_allclose(
        np.asarray(out_big),
        np.asarray(_reference(x_big, w, b, cls_token, pos_embed)),
        rtol=1e-5, atol=1e-5)

    print("KERNEL_OK")
</pallas_src>

<mosaic_0001>
module attributes {stable_mosaic.version = 11 : i64} {
  func.func @_patch_embed_kernel(%arg0: i32, %arg1: memref<86x3xf32, #tpu.memory_space<vmem>>, %arg2: memref<3x128xf32, #tpu.memory_space<vmem>>, %arg3: memref<86x128xf32, #tpu.memory_space<vmem>>, %arg4: memref<86x128xf32, #tpu.memory_space<vmem>>) attributes {dimension_semantics = [#tpu.dimension_semantics<parallel>], iteration_bounds = array<i64: 1>, scalar_prefetch = 0 : i64, scratch_operands = 0 : i64, tpu.core_type = #tpu.core_type<tc>, window_params = [{transform_indices = @transform_0, window_bounds = array<i64: 86, 3>}, {pipeline_mode = #tpu.pipeline_mode<synchronous>, transform_indices = @transform_1, window_bounds = array<i64: 3, 128>}, {pipeline_mode = #tpu.pipeline_mode<synchronous>, transform_indices = @transform_2, window_bounds = array<i64: 86, 128>}, {transform_indices = @transform_3, window_bounds = array<i64: 86, 128>}]} {
    %c0 = arith.constant 0 : index
    %c0_0 = arith.constant 0 : index
    %0 = vector.load %arg1[%c0, %c0_0] : memref<86x3xf32, #tpu.memory_space<vmem>>, vector<86x3xf32>
    %c0_1 = arith.constant 0 : index
    %c0_2 = arith.constant 0 : index
    %1 = vector.load %arg2[%c0_1, %c0_2] : memref<3x128xf32, #tpu.memory_space<vmem>>, vector<3x128xf32>
    %cst = arith.constant dense<0.000000e+00> : vector<86x128xf32>
    %2 = tpu.matmul %0, %1, %cst {dimension_numbers = #tpu.dot_dimension_numbers<[1], [0], [0], [1], [0, 0, 1, 1], [], []>} : vector<86x3xf32>, vector<3x128xf32>, vector<86x128xf32> -> vector<86x128xf32>
    %c0_3 = arith.constant 0 : index
    %c0_4 = arith.constant 0 : index
    %3 = vector.load %arg3[%c0_3, %c0_4] : memref<86x128xf32, #tpu.memory_space<vmem>>, vector<86x128xf32>
    %4 = arith.addf %2, %3 : vector<86x128xf32>
    %c0_5 = arith.constant 0 : index
    %c0_6 = arith.constant 0 : index
    %5 = vector.load %arg4[%c0_5, %c0_6] : memref<86x128xf32, #tpu.memory_space<vmem>>, vector<86x128xf32>
    tpu.vector_store %arg4[%c0_5, %c0_6], %4 {strides = array<i32>} : memref<86x128xf32, #tpu.memory_space<vmem>>, vector<86x128xf32>,
    return
  }
  func.func @transform_0(%arg0: i32) -> (i32, i32) {
    %c0_i32 = arith.constant 0 : i32
    %c0_i32_0 = arith.constant 0 : i32
    return %arg0, %c0_i32 : i32, i32
  }
  func.func @transform_1(%arg0: i32) -> (i32, i32) {
    %c0_i32 = arith.constant 0 : i32
    %c0_i32_0 = arith.constant 0 : i32
    %c0_i32_1 = arith.constant 0 : i32
    return %c0_i32, %c0_i32_0 : i32, i32
  }
  func.func @transform_2(%arg0: i32) -> (i32, i32) {
    %c0_i32 = arith.constant 0 : i32
    %c0_i32_0 = arith.constant 0 : i32
    %c0_i32_1 = arith.constant 0 : i32
    return %c0_i32, %c0_i32_0 : i32, i32
  }
  func.func @transform_3(%arg0: i32) -> (i32, i32) {
    %c0_i32 = arith.constant 0 : i32
    %c0_i32_0 = arith.constant 0 : i32
    return %arg0, %c0_i32 : i32, i32
  }
}

</mosaic_0001>

<llo_original>
// kernel: tpu_custom_call.1
$region0: #{tpu_custom_call.1}
  #allocation0 [shape = 'u32[]', space=smem, size = 0x4, offset = 0x4, fixed_abs, tag = 'smem constant byte address 0x4 - core index']
  #allocation1 [shape = 'u32[144,128]{1,0:T(1,128)}', space=vmem, size = 0x12000, scoped, tag = 'internal scratch']
  %s0 = inlined_call_operand.vmem [shape: f32[86,3], index: 0, kind: input, shape index: {}]
  %s1 = inlined_call_operand.vmem [shape: f32[3,128], index: 1, kind: input, shape index: {}]
  %s2 = inlined_call_operand.vmem [shape: f32[86,128], index: 2, kind: input, shape index: {}]
  %s3 = inlined_call_operand.hbm [shape: f32[86,128], index: 3, kind: output, shape index: {}]
  %s4 = sld [smem:[#allocation0]]
  $region22: #{tpu_custom_call.1} parent=0
    _
  %s6 = ssub.s32 1, %s4
  %s7 = scalar_select 0, %s6, %s4
  $region1: #{tpu_custom_call.1} parent=0
    #allocation2 [shape = 'u8[45056]{0}', space=vmem, size = 0xb000, scoped, tag = 'output window, operand 0, single buffered']
    #allocation3 [shape = 's32[1]{0}', space=sflag, size = 0x4, scoped, tag = 'scoped memory for tpu_custom_call.1']
    %8 = vsyncpa [#allocation3], 0
    // Predicated region
    $region2: #{tpu_custom_call.1} parent=1 // pred_check
      _
    $region3: #{tpu_custom_call.1} parent=1 // pred_check_branch
      %10 = sbr.rel (0) target = $region5
    $region4: #{tpu_custom_call.1} parent=1 // pred_region
      _
    $region5: #{tpu_custom_call.1} parent=1 // pred_fallthru
      _
    // Predicated region
    $region6: #{tpu_custom_call.1} parent=1 // pred_check
      _
    $region7: #{tpu_custom_call.1} parent=1 // pred_check_branch
      %12 = sbr.rel (0) target = $region9
    $region8: #{tpu_custom_call.1} parent=1 // pred_region
      _
    $region9: #{tpu_custom_call.1} parent=1 // pred_fallthru
      _
    // Predicated region
    $region10: #{tpu_custom_call.1} parent=1 // pred_check
      _
    $region11: #{tpu_custom_call.1} parent=1 // pred_check_branch
      %14 = sbr.rel (0) target = $region13
    $region12: #{tpu_custom_call.1} parent=1 // pred_region
      _
    $region13: #{tpu_custom_call.1} parent=1 // pred_fallthru
      _
    %v15 = vld [vmem:[%s0] sm:$0xff]
    %v16 = vld [vmem:[%s0 + $0x8] sm:$0xff]
    %v17 = vld [vmem:[%s0 + $0x10] sm:$0xff]
    %v18 = vld [vmem:[%s0 + $0x18] sm:$0xff]
    %v19 = vld [vmem:[%s0 + $0x20] sm:$0xff]
    %v20 = vld [vmem:[%s0 + $0x28] sm:$0xff]
    %v21 = vld [vmem:[%s0 + $0x30] sm:$0xff]
    %v22 = vld [vmem:[%s0 + $0x38] sm:$0xff]
    %v23 = vld [vmem:[%s0 + $0x40] sm:$0xff]
    %v24 = vld [vmem:[%s0 + $0x48] sm:$0xff]
    %v25 = vld [vmem:[%s0 + $0x50] sm:$0x3f]
    %v26 = vld [vmem:[%s1] sm:$0x7]
    %v27 = vld [vmem:[%s2] sm:$0xff]
    %v28 = vld [vmem:[%s2 + $0x8] sm:$0xff]
    %v29 = vld [vmem:[%s2 + $0x10] sm:$0xff]
    %v30 = vld [vmem:[%s2 + $0x18] sm:$0xff]
    %v31 = vld [vmem:[%s2 + $0x20] sm:$0xff]
    %v32 = vld [vmem:[%s2 + $0x28] sm:$0xff]
    %v33 = vld [vmem:[%s2 + $0x30] sm:$0xff]
    %v34 = vld [vmem:[%s2 + $0x38] sm:$0xff]
    %v35 = vld [vmem:[%s2 + $0x40] sm:$0xff]
    %v36 = vld [vmem:[%s2 + $0x48] sm:$0xff]
    %v37 = vld [vmem:[%s2 + $0x50] sm:$0x3f]
    %vm38 = vcmask 23552
    %v40 = vsel %vm38, %v15, 0
    %v43 = vsel %vm38, %v16, 0
    %v46 = vsel %vm38, %v17, 0
    %v49 = vsel %vm38, %v18, 0
    %v52 = vsel %vm38, %v19, 0
    %v55 = vsel %vm38, %v20, 0
    %v58 = vsel %vm38, %v21, 0
    %v61 = vsel %vm38, %v22, 0
    %v64 = vsel %vm38, %v23, 0
    %v67 = vsel %vm38, %v24, 0
    %v70 = vsel %vm38, %v25, 0
    %vm72 = vcmask 1042432
    %v74 = vsel %vm72, %v26, 0
    %76 = vmatprep.subr.mxu0 0.0
    %77 = vmatpush1.msra.mxu0 0.0
    %78 = vmatprep.subr.mxu0 0.0
    %79 = vmatpush1.msra.mxu0 0.0
    %80 = vmatprep.subr.mxu0 0.0
    %81 = vmatpush1.msra.mxu0 0.0
    %82 = vmatprep.subr.mxu0 0.0
    %83 = vmatpush1.msra.mxu0 0.0
    %84 = vmatprep.subr.mxu0 0.0
    %85 = vmatpush1.msra.mxu0 0.0
    %86 = vmatprep.subr.mxu0 0.0
    %87 = vmatpush1.msra.mxu0 0.0
    %88 = vmatprep.subr.mxu0 0.0
    %89 = vmatpush1.msra.mxu0 0.0
    %90 = vmatprep.subr.mxu0 0.0
    %91 = vmatpush1.msra.mxu0 0.0
    %92 = vmatprep.subr.mxu0 0.0
    %93 = vmatpush1.msra.mxu0 0.0
    %94 = vmatprep.subr.mxu0 0.0
    %95 = vmatpush1.msra.mxu0 0.0
    %96 = vmatprep.subr.mxu0 0.0
    %97 = vmatpush1.msra.mxu0 0.0
    %98 = vmatprep.subr.mxu0 0.0
    %99 = vmatpush1.msra.mxu0 0.0
    %100 = vmatprep.subr.mxu0 0.0
    %101 = vmatpush1.msra.mxu0 0.0
    %102 = vmatprep.subr.mxu0 0.0
    %103 = vmatpush1.msra.mxu0 0.0
    %104 = vmatprep.subr.mxu0 0.0
    %105 = vmatpush1.msra.mxu0 0.0
    %106 = vmatprep.subr.mxu0 0.0
    %107 = vmatpush1.msra.mxu0 %v74
    %108 = vmatprep.subr.mxu0 0.0
    %109 = vmatpush2.msra.mxu0 0.0
    %110 = vmatprep.subr.mxu0 0.0
    %111 = vmatpush2.msra.mxu0 0.0
    %112 = vmatprep.subr.mxu0 0.0
    %113 = vmatpush2.msra.mxu0 0.0
    %114 = vmatprep.subr.mxu0 0.0
    %115 = vmatpush2.msra.mxu0 0.0
    %116 = vmatprep.subr.mxu0 0.0
    %117 = vmatpush2.msra.mxu0 0.0
    %118 = vmatprep.subr.mxu0 0.0
    %119 = vmatpush2.msra.mxu0 0.0
    %120 = vmatprep.subr.mxu0 0.0
    %121 = vmatpush2.msra.mxu0 0.0
    %122 = vmatprep.subr.mxu0 0.0
    %123 = vmatpush2.msra.mxu0 0.0
    %124 = vmatprep.subr.mxu0 0.0
    %125 = vmatpush2.msra.mxu0 0.0
    %126 = vmatprep.subr.mxu0 0.0
    %127 = vmatpush2.msra.mxu0 0.0
    %128 = vmatprep.subr.mxu0 0.0
    %129 = vmatpush2.msra.mxu0 0.0
    %130 = vmatprep.subr.mxu0 0.0
    %131 = vmatpush2.msra.mxu0 0.0
    %132 = vmatprep.subr.mxu0 0.0
    %133 = vmatpush2.msra.mxu0 0.0
    %134 = vmatprep.subr.mxu0 0.0
    %135 = vmatpush2.msra.mxu0 0.0
    %136 = vmatprep.subr.mxu0 0.0
    %137 = vmatpush2.msra.mxu0 0.0
    %138 = vmatprep.subr.mxu0 0.0
    %139 = vmatpush2.msra.mxu0 0.0
    %140 = vmatprep.mubr.f32.mxu0 0.0
    %141 = vmatmul.mubr.f32.gmra.mxu0 %v40
    %v142 = vpop.f32.mrf.mxu0
    %v143 = vadd.f32 %v27, %v142
    %v144 = vpop.f32.mrf.mxu0
    %145 = vmatprep.mubr.f32.mxu0 0.0
    %146 = vmatmul.mubr.f32.gmra.mxu0 %v43
    %v147 = vpop.f32.mrf.mxu0
    %v148 = vadd.f32 %v28, %v147
    %v149 = vpop.f32.mrf.mxu0
    %150 = vmatprep.mubr.f32.mxu0 0.0
    %151 = vmatmul.mubr.f32.gmra.mxu0 %v46
    %v152 = vpop.f32.mrf.mxu0
    %v153 = vadd.f32 %v29, %v152
    %v154 = vpop.f32.mrf.mxu0
    %155 = vmatprep.mubr.f32.mxu0 0.0
    %156 = vmatmul.mubr.f32.gmra.mxu0 %v49
    %v157 = vpop.f32.mrf.mxu0
    %v158 = vadd.f32 %v30, %v157
    %v159 = vpop.f32.mrf.mxu0
    %160 = vmatprep.mubr.f32.mxu0 0.0
    %161 = vmatmul.mubr.f32.gmra.mxu0 %v52
    %v162 = vpop.f32.mrf.mxu0
    %v163 = vadd.f32 %v31, %v162
    %v164 = vpop.f32.mrf.mxu0
    %165 = vmatprep.mubr.f32.mxu0 0.0
    %166 = vmatmul.mubr.f32.gmra.mxu0 %v55
    %v167 = vpop.f32.mrf.mxu0
    %v168 = vadd.f32 %v32, %v167
    %v169 = vpop.f32.mrf.mxu0
    %170 = vmatprep.mubr.f32.mxu0 0.0
    %171 = vmatmul.mubr.f32.gmra.mxu0 %v58
    %v172 = vpop.f32.mrf.mxu0
    %v173 = vadd.f32 %v33, %v172
    %v174 = vpop.f32.mrf.mxu0
    %175 = vmatprep.mubr.f32.mxu0 0.0
    %176 = vmatmul.mubr.f32.gmra.mxu0 %v61
    %v177 = vpop.f32.mrf.mxu0
    %v178 = vadd.f32 %v34, %v177
    %v179 = vpop.f32.mrf.mxu0
    %180 = vmatprep.mubr.f32.mxu0 0.0
    %181 = vmatmul.mubr.f32.gmra.mxu0 %v64
    %v182 = vpop.f32.mrf.mxu0
    %v183 = vadd.f32 %v35, %v182
    %v184 = vpop.f32.mrf.mxu0
    %185 = vmatprep.mubr.f32.mxu0 0.0
    %186 = vmatmul.mubr.f32.gmra.mxu0 %v67
    %v187 = vpop.f32.mrf.mxu0
    %v188 = vadd.f32 %v36, %v187
    %v189 = vpop.f32.mrf.mxu0
    %190 = vmatprep.mubr.f32.mxu0 0.0
    %191 = vmatmul.mubr.f32.gmra.mxu0 %v70
    %v192 = vpop.f32.mrf.mxu0
    %v193 = vadd.f32 %v37, %v192
    %v194 = vpop.f32.mrf.mxu0
    %195 = vdwg.mxu0
    %196 = vst [vmem:[#allocation2] sm:$0xff] %v143
    %197 = vst [vmem:[#allocation2 + $0x8] sm:$0xff] %v148
    %198 = vst [vmem:[#allocation2 + $0x10] sm:$0xff] %v153
    %199 = vst [vmem:[#allocation2 + $0x18] sm:$0xff] %v158
    %200 = vst [vmem:[#allocation2 + $0x20] sm:$0xff] %v163
    %201 = vst [vmem:[#allocation2 + $0x28] sm:$0xff] %v168
    %202 = vst [vmem:[#allocation2 + $0x30] sm:$0xff] %v173
    %203 = vst [vmem:[#allocation2 + $0x38] sm:$0xff] %v178
    %204 = vst [vmem:[#allocation2 + $0x40] sm:$0xff] %v183
    %205 = vst [vmem:[#allocation2 + $0x48] sm:$0xff] %v188
    %206 = vst [vmem:[#allocation2 + $0x50] sm:$0x3f] %v193
    // Predicated region
    $region14: #{tpu_custom_call.1} parent=1 // pred_check
      _
    $region15: #{tpu_custom_call.1} parent=1 // pred_check_branch
      %208 = sbr.rel (0) target = $region17
    $region16: #{tpu_custom_call.1} parent=1 // pred_region
      %s210 = ssub.s32 1408, 1408
      %211 = vsyncadd [#allocation3], %s210
      %s212 = sshll.u32 [#allocation2], 4
      %s213 = int_to_ptr.vmem [resolvable:$true] %s212
      %218 = dma.vmem_to_hbm [thread:$0]  %s213, 1408, %s3, [#allocation3], 128, 128, 8
    $region17: #{tpu_custom_call.1} parent=1 // pred_fallthru
      _
    // Predicated region
    $region18: #{tpu_custom_call.1} parent=1 // pred_check
      _
    $region19: #{tpu_custom_call.1} parent=1 // pred_check_branch
      %220 = sbr.rel (0) target = $region21
    $region20: #{tpu_custom_call.1} parent=1 // pred_region
      %221 = dma.done [#allocation3], 1408
    $region21: #{tpu_custom_call.1} parent=1 // pred_fallthru
      _
    %222 = vsyncpa [#allocation3], 1

</llo_original>
